<compile_context>
chip_gen: v7x
topology: tpu7x:2x2x1
jax: 0.10.0
libtpu: 0.0.40
codegen_flags: <defaults>
</compile_context>

<pallas_src>
import functools

import jax
import jax.numpy as jnp
from jax.experimental import pallas as pl
from jax.experimental.pallas import tpu as pltpu


def _negpearson_partials_kernel(preds_ref, labels_ref,
                                sx_out, sy_out, sxy_out, sx2_out, sy2_out,
                                sx_ref, sy_ref, sxy_ref, sx2_ref, sy2_ref,
                                *, n_slabs):
    """Accumulate per-row partial sums over the streamed T axis.

    Block = (tR, tT).  Scratch accumulators are lane-wide (tR, 128) f32 slabs
    so per-tile work is pure VPU adds; the single cross-lane (XLU) reduction
    happens once in the finalize step.
    """
    k = pl.program_id(1)

    @pl.when(k == 0)
    def _init():
        z = jnp.zeros(sx_ref.shape, sx_ref.dtype)
        sx_ref[...] = z
        sy_ref[...] = z
        sxy_ref[...] = z
        sx2_ref[...] = z
        sy2_ref[...] = z

    sx = sx_ref[...]
    sy = sy_ref[...]
    sxy = sxy_ref[...]
    sx2 = sx2_ref[...]
    sy2 = sy2_ref[...]
    # Static, lane-aligned 128-wide slabs.  With tR <= 32 the five (tR, 128)
    # f32 accumulators need <= 20 vregs, so this unrolled loop is spill-free.
    for j in range(n_slabs):
        xs = preds_ref[:, j * 128:(j + 1) * 128].astype(jnp.float32)
        ys = labels_ref[:, j * 128:(j + 1) * 128].astype(jnp.float32)
        sx = sx + xs
        sy = sy + ys
        sxy = sxy + xs * ys
        sx2 = sx2 + xs * xs
        sy2 = sy2 + ys * ys
    sx_ref[...] = sx
    sy_ref[...] = sy
    sxy_ref[...] = sxy
    sx2_ref[...] = sx2
    sy2_ref[...] = sy2

    @pl.when(k == pl.num_programs(1) - 1)
    def _finalize():
        sx_out[...] = jnp.sum(sx, axis=-1, keepdims=True)
        sy_out[...] = jnp.sum(sy, axis=-1, keepdims=True)
        sxy_out[...] = jnp.sum(sxy, axis=-1, keepdims=True)
        sx2_out[...] = jnp.sum(sx2, axis=-1, keepdims=True)
        sy2_out[...] = jnp.sum(sy2, axis=-1, keepdims=True)


def _round_up(x, m):
    return ((x + m - 1) // m) * m


def _choose_fold(batch, t_len, row_target=32):
    """Sublane folding: view (B, T) as (B*F, T/F) to fill sublanes / per-step DMA."""
    if batch >= row_target:
        return 1
    for f in (32, 16, 8, 4, 2):
        if batch * f <= row_target and t_len % f == 0:
            return f
    return 1


def _choose_row_tile(rows, sub, max_tile=32):
    """Row tile: multiple of `sub`, <= 32 (vreg budget), minimal zero padding,
    and >= 2 row blocks whenever `rows` can be split (v7x megacore)."""
    best_t, best_pad = None, None
    for t in range(sub, max_tile + 1, sub):
        n_blk = -(-rows // t)
        if rows >= 2 * sub and n_blk < 2:
            continue
        pad = n_blk * t - rows
        if best_pad is None or pad < best_pad or (pad == best_pad and t > best_t):
            best_t, best_pad = t, pad
    return best_t


def neg_pearson_loss(preds, labels):
    assert preds.shape == labels.shape and preds.ndim == 2
    B, T = preds.shape

    # bf16/f32 ingested directly (mem-bound: fewer HBM bytes); others upcast.
    # Arithmetic is always f32 in-kernel.
    if preds.dtype not in (jnp.bfloat16, jnp.float32):
        preds = preds.astype(jnp.float32)
    if labels.dtype not in (jnp.bfloat16, jnp.float32):
        labels = labels.astype(jnp.float32)
    if preds.dtype != labels.dtype:
        preds = preds.astype(jnp.float32)
        labels = labels.astype(jnp.float32)
    itemsize = jnp.dtype(preds.dtype).itemsize
    sub = 8 if itemsize == 4 else 16            # native sublane tile height

    # --- Sublane folding for small batches: (B, T) -> (B*F, T/F). ---
    F = _choose_fold(B, T)
    R = B * F
    T_f = T // F

    # --- Row tiling (tR <= 32 keeps accumulators register-resident). ---
    tR = _choose_row_tile(R, sub)
    n_b = -(-R // tR)
    R_pad = n_b * tR

    # --- T tiling: large lane-aligned blocks, T zero-padded to a multiple. ---
    # Per-input block capped at 2 MiB and 64 (f32) / 128 (bf16) slabs: the
    # double-buffered footprint stays <= ~4.2 MiB, well inside every
    # generation's default scoped VMEM (v5e 16 MiB), so no vmem_limit bump,
    # while per-step DMA is 4-8x the previous version's (v7x / bf16 roofline).
    max_slabs = 64 if itemsize == 4 else 128
    block_byte_cap = 2 << 20
    tT_cap = min(max_slabs * 128,
                 max(128, (block_byte_cap // (tR * itemsize)) // 128 * 128))
    T_128 = _round_up(T_f, 128)
    n_k = -(-T_128 // min(T_128, tT_cap))
    tT = 128 * (-(-T_128 // (128 * n_k)))
    T_pad = n_k * tT
    n_slabs = tT // 128

    x = preds.reshape(R, T_f)                   # row-major reshape: free
    y = labels.reshape(R, T_f)
    if R_pad != R or T_pad != T_f:
        # Zero padding is exact: padded elements contribute 0 to every sum and
        # padded rows are sliced off before the Pearson formula.
        pad = ((0, R_pad - R), (0, T_pad - T_f))
        x = jnp.pad(x, pad)
        y = jnp.pad(y, pad)

    kernel = functools.partial(_negpearson_partials_kernel, n_slabs=n_slabs)

    outs = pl.pallas_call(
        kernel,
        out_shape=[jax.ShapeDtypeStruct((R_pad, 1), jnp.float32)] * 5,
        grid=(n_b, n_k),
        in_specs=[pl.BlockSpec((tR, tT), lambda b, k: (b, k)),
                  pl.BlockSpec((tR, tT), lambda b, k: (b, k))],
        out_specs=[pl.BlockSpec((tR, 1), lambda b, k: (b, 0))] * 5,
        scratch_shapes=[pltpu.VMEM((tR, 128), jnp.float32)] * 5,
        compiler_params=pltpu.CompilerParams(
            dimension_semantics=("parallel", "arbitrary")),
    )(x, y)

    def _combine(p):
        p = p[:R, 0]
        if F > 1:
            p = p.reshape(B, F).sum(axis=1)     # merge folded partial rows
        return p

    sum_x, sum_y, sum_xy, sum_x2, sum_y2 = (_combine(p) for p in outs)

    # Tiny finalize in plain JAX (keeps the B grid axis "parallel" with no
    # cross-core scalar reduction).  Plain sqrt matches the PyTorch module's
    # semantics exactly (NaN/Inf for zero-variance rows) — no silent epsilon.
    N = jnp.float32(T)
    num = N * sum_xy - sum_x * sum_y
    den = (N * sum_x2 - sum_x * sum_x) * (N * sum_y2 - sum_y * sum_y)
    pearson = num / jnp.sqrt(den)
    return jnp.mean(1.0 - pearson)


def neg_pearson_loss_ref(preds, labels):
    # Pure-JAX reference mirroring the PyTorch loop semantics (f32 math).
    preds = preds.astype(jnp.float32)
    labels = labels.astype(jnp.float32)
    _, N = preds.shape
    sum_x = jnp.sum(preds, axis=1)
    sum_y = jnp.sum(labels, axis=1)
    sum_xy = jnp.sum(preds * labels, axis=1)
    sum_x2 = jnp.sum(preds ** 2, axis=1)
    sum_y2 = jnp.sum(labels ** 2, axis=1)
    pearson = (N * sum_xy - sum_x * sum_y) / jnp.sqrt(
        (N * sum_x2 - sum_x ** 2) * (N * sum_y2 - sum_y ** 2))
    return jnp.mean(1.0 - pearson)


if __name__ == "__main__":
    key = jax.random.PRNGKey(0)
    ks = jax.random.split(key, 7)

    # --- Test 1: tiny f32, non-128-aligned T (sublane folding + T padding) ---
    B1, T1 = 2, 160
    p1 = jax.random.normal(ks[0], (B1, T1), dtype=jnp.float32)
    l1 = (0.7 * p1 + 0.3 * jax.random.normal(ks[1], (B1, T1), dtype=jnp.float32)
          + jax.random.normal(ks[2], (B1, 1), dtype=jnp.float32))
    out1 = neg_pearson_loss(p1, l1)
    jax.block_until_ready(out1)
    ref1 = neg_pearson_loss_ref(p1, l1)
    assert jnp.allclose(out1, ref1, atol=2e-4, rtol=2e-4), (out1, ref1)

    # --- Test 2: bf16 inputs (bf16 ingest, 16-row sublane tiles, folding) ---
    B2, T2 = 8, 4096
    p2f = jax.random.normal(ks[3], (B2, T2), dtype=jnp.float32)
    l2f = 0.5 * p2f + 0.5 * jax.random.normal(ks[4], (B2, T2), dtype=jnp.float32)
    p2, l2 = p2f.astype(jnp.bfloat16), l2f.astype(jnp.bfloat16)
    out2 = neg_pearson_loss(p2, l2)
    jax.block_until_ready(out2)
    ref2 = neg_pearson_loss_ref(p2, l2)
    assert jnp.allclose(out2, ref2, atol=2e-3, rtol=2e-3), (out2, ref2)

    # --- Test 3: f32, B not a multiple of 8, ragged T long enough for a
    # multi-step streamed reduction over the T grid axis (row + T padding) ---
    B3, T3 = 20, 10000
    p3 = jax.random.normal(ks[5], (B3, T3), dtype=jnp.float32)
    l3 = 0.8 * p3 + 0.2 * jax.random.normal(ks[6], (B3, T3), dtype=jnp.float32)
    out3 = neg_pearson_loss(p3, l3)
    jax.block_until_ready(out3)
    ref3 = neg_pearson_loss_ref(p3, l3)
    assert jnp.allclose(out3, ref3, atol=2e-4, rtol=2e-4), (out3, ref3)

    print("KERNEL_OK")
</pallas_src>

<mosaic_0001>
module attributes {stable_mosaic.version = 11 : i64} {
  func.func @_negpearson_partials_kernel(%arg0: i32, %arg1: i32, %arg2: memref<16x128xf32, #tpu.memory_space<vmem>>, %arg3: memref<16x128xf32, #tpu.memory_space<vmem>>, %arg4: memref<16x1xf32, #tpu.memory_space<vmem>>, %arg5: memref<16x1xf32, #tpu.memory_space<vmem>>, %arg6: memref<16x1xf32, #tpu.memory_space<vmem>>, %arg7: memref<16x1xf32, #tpu.memory_space<vmem>>, %arg8: memref<16x1xf32, #tpu.memory_space<vmem>>, %arg9: memref<16x128xf32, #tpu.memory_space<vmem>>, %arg10: memref<16x128xf32, #tpu.memory_space<vmem>>, %arg11: memref<16x128xf32, #tpu.memory_space<vmem>>, %arg12: memref<16x128xf32, #tpu.memory_space<vmem>>, %arg13: memref<16x128xf32, #tpu.memory_space<vmem>>) attributes {dimension_semantics = [#tpu.dimension_semantics<parallel>, #tpu.dimension_semantics<arbitrary>], iteration_bounds = array<i64: 2, 1>, scalar_prefetch = 0 : i64, scratch_operands = 5 : i64, tpu.core_type = #tpu.core_type<tc>, window_params = [{transform_indices = @transform_0, window_bounds = array<i64: 16, 128>}, {transform_indices = @transform_1, window_bounds = array<i64: 16, 128>}, {transform_indices = @transform_2, window_bounds = array<i64: 16, 1>}, {transform_indices = @transform_3, window_bounds = array<i64: 16, 1>}, {transform_indices = @transform_4, window_bounds = array<i64: 16, 1>}, {transform_indices = @transform_5, window_bounds = array<i64: 16, 1>}, {transform_indices = @transform_6, window_bounds = array<i64: 16, 1>}]} {
    %c0_i32 = arith.constant 0 : i32
    %0 = arith.cmpi eq, %arg1, %c0_i32 : i32
    %1 = arith.extui %0 : i1 to i32
    %c0_i32_0 = arith.constant 0 : i32
    %2 = arith.cmpi ne, %1, %c0_i32_0 : i32
    scf.if %2 {
      %cst = arith.constant 0.000000e+00 : f32
      %26 = vector.broadcast %cst : f32 to vector<16x128xf32>
      %c0_26 = arith.constant 0 : index
      %c0_27 = arith.constant 0 : index
      %27 = vector.load %arg9[%c0_26, %c0_27] : memref<16x128xf32, #tpu.memory_space<vmem>>, vector<16x128xf32>
      tpu.vector_store %arg9[%c0_26, %c0_27], %26 {strides = array<i32>} : memref<16x128xf32, #tpu.memory_space<vmem>>, vector<16x128xf32>,
      %c0_28 = arith.constant 0 : index
      %c0_29 = arith.constant 0 : index
      %28 = vector.load %arg10[%c0_28, %c0_29] : memref<16x128xf32, #tpu.memory_space<vmem>>, vector<16x128xf32>
      tpu.vector_store %arg10[%c0_28, %c0_29], %26 {strides = array<i32>} : memref<16x128xf32, #tpu.memory_space<vmem>>, vector<16x128xf32>,
      %c0_30 = arith.constant 0 : index
      %c0_31 = arith.constant 0 : index
      %29 = vector.load %arg11[%c0_30, %c0_31] : memref<16x128xf32, #tpu.memory_space<vmem>>, vector<16x128xf32>
      tpu.vector_store %arg11[%c0_30, %c0_31], %26 {strides = array<i32>} : memref<16x128xf32, #tpu.memory_space<vmem>>, vector<16x128xf32>,
      %c0_32 = arith.constant 0 : index
      %c0_33 = arith.constant 0 : index
      %30 = vector.load %arg12[%c0_32, %c0_33] : memref<16x128xf32, #tpu.memory_space<vmem>>, vector<16x128xf32>
      tpu.vector_store %arg12[%c0_32, %c0_33], %26 {strides = array<i32>} : memref<16x128xf32, #tpu.memory_space<vmem>>, vector<16x128xf32>,
      %c0_34 = arith.constant 0 : index
      %c0_35 = arith.constant 0 : index
      %31 = vector.load %arg13[%c0_34, %c0_35] : memref<16x128xf32, #tpu.memory_space<vmem>>, vector<16x128xf32>
      tpu.vector_store %arg13[%c0_34, %c0_35], %26 {strides = array<i32>} : memref<16x128xf32, #tpu.memory_space<vmem>>, vector<16x128xf32>,
    } else {
    }
    %c0 = arith.constant 0 : index
    %c0_1 = arith.constant 0 : index
    %3 = vector.load %arg9[%c0, %c0_1] : memref<16x128xf32, #tpu.memory_space<vmem>>, vector<16x128xf32>
    %c0_2 = arith.constant 0 : index
    %c0_3 = arith.constant 0 : index
    %4 = vector.load %arg10[%c0_2, %c0_3] : memref<16x128xf32, #tpu.memory_space<vmem>>, vector<16x128xf32>
    %c0_4 = arith.constant 0 : index
    %c0_5 = arith.constant 0 : index
    %5 = vector.load %arg11[%c0_4, %c0_5] : memref<16x128xf32, #tpu.memory_space<vmem>>, vector<16x128xf32>
    %c0_6 = arith.constant 0 : index
    %c0_7 = arith.constant 0 : index
    %6 = vector.load %arg12[%c0_6, %c0_7] : memref<16x128xf32, #tpu.memory_space<vmem>>, vector<16x128xf32>
    %c0_8 = arith.constant 0 : index
    %c0_9 = arith.constant 0 : index
    %7 = vector.load %arg13[%c0_8, %c0_9] : memref<16x128xf32, #tpu.memory_space<vmem>>, vector<16x128xf32>
    %c0_10 = arith.constant 0 : index
    %c0_11 = arith.constant 0 : index
    %8 = vector.load %arg2[%c0_10, %c0_11] : memref<16x128xf32, #tpu.memory_space<vmem>>, vector<16x128xf32>
    %c0_12 = arith.constant 0 : index
    %c0_13 = arith.constant 0 : index
    %9 = vector.load %arg3[%c0_12, %c0_13] : memref<16x128xf32, #tpu.memory_space<vmem>>, vector<16x128xf32>
    %10 = arith.addf %3, %8 : vector<16x128xf32>
    %11 = arith.addf %4, %9 : vector<16x128xf32>
    %12 = arith.mulf %8, %9 : vector<16x128xf32>
    %13 = arith.addf %5, %12 : vector<16x128xf32>
    %14 = arith.mulf %8, %8 : vector<16x128xf32>
    %15 = arith.addf %6, %14 : vector<16x128xf32>
    %16 = arith.mulf %9, %9 : vector<16x128xf32>
    %17 = arith.addf %7, %16 : vector<16x128xf32>
    %c0_14 = arith.constant 0 : index
    %c0_15 = arith.constant 0 : index
    %18 = vector.load %arg9[%c0_14, %c0_15] : memref<16x128xf32, #tpu.memory_space<vmem>>, vector<16x128xf32>
    tpu.vector_store %arg9[%c0_14, %c0_15], %10 {strides = array<i32>} : memref<16x128xf32, #tpu.memory_space<vmem>>, vector<16x128xf32>,
    %c0_16 = arith.constant 0 : index
    %c0_17 = arith.constant 0 : index
    %19 = vector.load %arg10[%c0_16, %c0_17] : memref<16x128xf32, #tpu.memory_space<vmem>>, vector<16x128xf32>
    tpu.vector_store %arg10[%c0_16, %c0_17], %11 {strides = array<i32>} : memref<16x128xf32, #tpu.memory_space<vmem>>, vector<16x128xf32>,
    %c0_18 = arith.constant 0 : index
    %c0_19 = arith.constant 0 : index
    %20 = vector.load %arg11[%c0_18, %c0_19] : memref<16x128xf32, #tpu.memory_space<vmem>>, vector<16x128xf32>
    tpu.vector_store %arg11[%c0_18, %c0_19], %13 {strides = array<i32>} : memref<16x128xf32, #tpu.memory_space<vmem>>, vector<16x128xf32>,
    %c0_20 = arith.constant 0 : index
    %c0_21 = arith.constant 0 : index
    %21 = vector.load %arg12[%c0_20, %c0_21] : memref<16x128xf32, #tpu.memory_space<vmem>>, vector<16x128xf32>
    tpu.vector_store %arg12[%c0_20, %c0_21], %15 {strides = array<i32>} : memref<16x128xf32, #tpu.memory_space<vmem>>, vector<16x128xf32>,
    %c0_22 = arith.constant 0 : index
    %c0_23 = arith.constant 0 : index
    %22 = vector.load %arg13[%c0_22, %c0_23] : memref<16x128xf32, #tpu.memory_space<vmem>>, vector<16x128xf32>
    tpu.vector_store %arg13[%c0_22, %c0_23], %17 {strides = array<i32>} : memref<16x128xf32, #tpu.memory_space<vmem>>, vector<16x128xf32>,
    %c0_i32_24 = arith.constant 0 : i32
    %23 = arith.cmpi eq, %arg1, %c0_i32_24 : i32
    %24 = arith.extui %23 : i1 to i32
    %c0_i32_25 = arith.constant 0 : i32
    %25 = arith.cmpi ne, %24, %c0_i32_25 : i32
    scf.if %25 {
      %cst = arith.constant dense<0.000000e+00> : vector<16xf32>
      %26 = vector.multi_reduction <add>, %10, %cst [1] : vector<16x128xf32> to vector<16xf32>
      %27 = vector.shape_cast %26 : vector<16xf32> to vector<16x1xf32>
      %c0_26 = arith.constant 0 : index
      %c0_27 = arith.constant 0 : index
      %28 = vector.load %arg4[%c0_26, %c0_27] : memref<16x1xf32, #tpu.memory_space<vmem>>, vector<16x1xf32>
      tpu.vector_store %arg4[%c0_26, %c0_27], %27 {strides = array<i32>} : memref<16x1xf32, #tpu.memory_space<vmem>>, vector<16x1xf32>,
      %cst_28 = arith.constant dense<0.000000e+00> : vector<16xf32>
      %29 = vector.multi_reduction <add>, %11, %cst_28 [1] : vector<16x128xf32> to vector<16xf32>
      %30 = vector.shape_cast %29 : vector<16xf32> to vector<16x1xf32>
      %c0_29 = arith.constant 0 : index
      %c0_30 = arith.constant 0 : index
      %31 = vector.load %arg5[%c0_29, %c0_30] : memref<16x1xf32, #tpu.memory_space<vmem>>, vector<16x1xf32>
      tpu.vector_store %arg5[%c0_29, %c0_30], %30 {strides = array<i32>} : memref<16x1xf32, #tpu.memory_space<vmem>>, vector<16x1xf32>,
      %cst_31 = arith.constant dense<0.000000e+00> : vector<16xf32>
      %32 = vector.multi_reduction <add>, %13, %cst_31 [1] : vector<16x128xf32> to vector<16xf32>
      %33 = vector.shape_cast %32 : vector<16xf32> to vector<16x1xf32>
      %c0_32 = arith.constant 0 : index
      %c0_33 = arith.constant 0 : index
      %34 = vector.load %arg6[%c0_32, %c0_33] : memref<16x1xf32, #tpu.memory_space<vmem>>, vector<16x1xf32>
      tpu.vector_store %arg6[%c0_32, %c0_33], %33 {strides = array<i32>} : memref<16x1xf32, #tpu.memory_space<vmem>>, vector<16x1xf32>,
      %cst_34 = arith.constant dense<0.000000e+00> : vector<16xf32>
      %35 = vector.multi_reduction <add>, %15, %cst_34 [1] : vector<16x128xf32> to vector<16xf32>
      %36 = vector.shape_cast %35 : vector<16xf32> to vector<16x1xf32>
      %c0_35 = arith.constant 0 : index
      %c0_36 = arith.constant 0 : index
      %37 = vector.load %arg7[%c0_35, %c0_36] : memref<16x1xf32, #tpu.memory_space<vmem>>, vector<16x1xf32>
      tpu.vector_store %arg7[%c0_35, %c0_36], %36 {strides = array<i32>} : memref<16x1xf32, #tpu.memory_space<vmem>>, vector<16x1xf32>,
      %cst_37 = arith.constant dense<0.000000e+00> : vector<16xf32>
      %38 = vector.multi_reduction <add>, %17, %cst_37 [1] : vector<16x128xf32> to vector<16xf32>
      %39 = vector.shape_cast %38 : vector<16xf32> to vector<16x1xf32>
      %c0_38 = arith.constant 0 : index
      %c0_39 = arith.constant 0 : index
      %40 = vector.load %arg8[%c0_38, %c0_39] : memref<16x1xf32, #tpu.memory_space<vmem>>, vector<16x1xf32>
      tpu.vector_store %arg8[%c0_38, %c0_39], %39 {strides = array<i32>} : memref<16x1xf32, #tpu.memory_space<vmem>>, vector<16x1xf32>,
    } else {
    }
    return
  }
  func.func @transform_0(%arg0: i32, %arg1: i32) -> (i32, i32) {
    %c0_i32 = arith.constant 0 : i32
    return %arg0, %arg1 : i32, i32
  }
  func.func @transform_1(%arg0: i32, %arg1: i32) -> (i32, i32) {
    %c0_i32 = arith.constant 0 : i32
    return %arg0, %arg1 : i32, i32
  }
  func.func @transform_2(%arg0: i32, %arg1: i32) -> (i32, i32) {
    %c0_i32 = arith.constant 0 : i32
    %c0_i32_0 = arith.constant 0 : i32
    return %arg0, %c0_i32 : i32, i32
  }
  func.func @transform_3(%arg0: i32, %arg1: i32) -> (i32, i32) {
    %c0_i32 = arith.constant 0 : i32
    %c0_i32_0 = arith.constant 0 : i32
    return %arg0, %c0_i32 : i32, i32
  }
  func.func @transform_4(%arg0: i32, %arg1: i32) -> (i32, i32) {
    %c0_i32 = arith.constant 0 : i32
    %c0_i32_0 = arith.constant 0 : i32
    return %arg0, %c0_i32 : i32, i32
  }
  func.func @transform_5(%arg0: i32, %arg1: i32) -> (i32, i32) {
    %c0_i32 = arith.constant 0 : i32
    %c0_i32_0 = arith.constant 0 : i32
    return %arg0, %c0_i32 : i32, i32
  }
  func.func @transform_6(%arg0: i32, %arg1: i32) -> (i32, i32) {
    %c0_i32 = arith.constant 0 : i32
    %c0_i32_0 = arith.constant 0 : i32
    return %arg0, %c0_i32 : i32, i32
  }
}

</mosaic_0001>

<llo_original>
// kernel: tpu_custom_call.1
$region0: #{tpu_custom_call.1}
  #allocation0 [shape = 'u32[]', space=smem, size = 0x4, offset = 0x4, fixed_abs, tag = 'smem constant byte address 0x4 - core index']
  #allocation1 [shape = 'u32[144,128]{1,0:T(1,128)}', space=vmem, size = 0x12000, scoped, tag = 'internal scratch']
  #allocation2 [shape = 'f32[16,128]{1,0:T(8,128)}', space=vmem, size = 0x2000, scoped, tag = 'scratch operand']
  #allocation3 [shape = 'f32[16,128]{1,0:T(8,128)}', space=vmem, size = 0x2000, scoped, tag = 'scratch operand']
  #allocation4 [shape = 'f32[16,128]{1,0:T(8,128)}', space=vmem, size = 0x2000, scoped, tag = 'scratch operand']
  #allocation5 [shape = 'f32[16,128]{1,0:T(8,128)}', space=vmem, size = 0x2000, scoped, tag = 'scratch operand']
  #allocation6 [shape = 'f32[16,128]{1,0:T(8,128)}', space=vmem, size = 0x2000, scoped, tag = 'scratch operand']
  %s0 = inlined_call_operand.hbm [shape: f32[32,128], index: 0, kind: input, shape index: {}]
  %s1 = inlined_call_operand.hbm [shape: f32[32,128], index: 1, kind: input, shape index: {}]
  %s2 = inlined_call_operand.vmem [shape: f32[32,1], index: 2, kind: output, shape index: {0}]
  %s3 = inlined_call_operand.vmem [shape: f32[32,1], index: 3, kind: output, shape index: {1}]
  %s4 = inlined_call_operand.vmem [shape: f32[32,1], index: 4, kind: output, shape index: {2}]
  %s5 = inlined_call_operand.vmem [shape: f32[32,1], index: 5, kind: output, shape index: {3}]
  %s6 = inlined_call_operand.vmem [shape: f32[32,1], index: 6, kind: output, shape index: {4}]
  %7 = xla_tuple %s2, %s3, %s4, %s5, %s6
  %s8 = sld [smem:[#allocation0]]
  $region89: #{tpu_custom_call.1} parent=0
    _
  %s10 = ssub.s32 1, %s8
  %s11 = scalar_select 0, %s10, %s8
  $region1: #{tpu_custom_call.1} parent=0
    #allocation7 [shape = 'u8[16384]{0}', space=vmem, size = 0x4000, scoped, tag = 'input window, operand 0']
    #allocation8 [shape = 's32[2]{0}', space=sflag, size = 0x8, scoped, tag = 'scoped memory for tpu_custom_call.1']
    #allocation9 [shape = 'u8[16384]{0}', space=vmem, size = 0x4000, scoped, tag = 'input window, operand 1']
    #allocation10 [shape = 's32[2]{0}', space=sflag, size = 0x8, scoped, tag = 'scoped memory for tpu_custom_call.1']
    %12 = vsyncpa [#allocation8], 0
    %s13 = scalar_lea.sflag [#allocation8], 1
    %14 = vsyncpa %s13, 0
    %15 = vsyncpa [#allocation10], 0
    %s16 = scalar_lea.sflag [#allocation10], 1
    %17 = vsyncpa %s16, 0
    loop: start=0, step=1, limit=4
    $region2: #{tpu_custom_call.1} parent=1 // loop_pre_header
      _
    $region3: #{tpu_custom_call.1} parent=1 // loop_header
      %s19 = sphi 0, %s23
      %p20 = scmp.ge.s32.totalorder %s19, 4
      %s26 = sphi 0, %s38
      %s27 = sphi 0, %s34
      %s28 = sphi 0, %s26
      %s29 = sphi 0, %s27
      %s30 = sphi 0, %s28
      %s31 = sphi 0, %s29
      %s43 = sphi 0, %s45
      %s46 = sphi 0, %s43
      %s47 = sphi 0, %s46
      %s63 = sphi 0, %s47
      %s71 = sphi 0, %s73
      %s74 = sphi 0, %s71
      %s75 = sphi 0, %s74
      %s91 = sphi 0, %s75
      %s97 = sphi 0, %s99
      %s100 = sphi 0, %s97
      %s101 = sphi 0, %s100
      %s117 = sphi 0, %s101
      %s123 = sphi 0, %s125
      %s126 = sphi 0, %s123
      %s127 = sphi 0, %s126
      %s143 = sphi 0, %s127
      %s149 = sphi 0, %s151
      %s152 = sphi 0, %s149
      %s153 = sphi 0, %s152
      %s169 = sphi 0, %s153
      %s175 = sphi 0, %s177
      %s178 = sphi 0, %s175
      %s179 = sphi 0, %s178
      %s195 = sphi 0, %s179
      %s201 = sphi 0, %s203
      %s204 = sphi 0, %s201
      %s205 = sphi 0, %s204
      %s221 = sphi 0, %s205
    $region4: #{tpu_custom_call.1} parent=1 // loop_header_branch
      %22 = sbr.rel (%p20) target = $region8
    $region5: #{tpu_custom_call.1} parent=1 // loop_body
      %s24 = ssub.s32 %s19, 1
      %s25 = ssub.s32 %s19, 2
      %s32 = sadd.s32 1, %s27
      %p33 = scmp.ge.s32.totalorder %s32, 1
      %s34 = scalar_select %p33, 0, %s32
      %s35 = sadd.s32 1, %s26
      %s36 = scalar_select %p33, %s35, %s26
      %p37 = scmp.ge.s32.totalorder %s36, 2
      %s38 = scalar_select %p37, 0, %s36
      %s39 = ssub.s32 %s26, %s38
      %s40 = ssub.s32 %s27, %s34
      %s41 = sor.u32 %s39, %s40
      %p42 = scmp.eq.s32.totalorder %s41, 0
      %s44 = sadd.s32 %s43, 1
      %s45 = scalar_select %p42, %s43, %s44
      %p48 = pneg %p42
      %p49 = scmp.eq.s32.totalorder %s19, 1
      %p50 = por %p48, %p49
      %p51 = scmp.ne.s32.totalorder %s43, %s46
      %p52 = scmp.eq.s32.totalorder %s19, 0
      %p53 = por %p51, %p52
      %p54 = scmp.ne.s32.totalorder %s43, %s46
      %p55 = scmp.eq.s32.totalorder %s24, 1
      %p56 = por %p54, %p55
      %p57 = scmp.ne.s32.totalorder %s46, %s47
      %p58 = scmp.eq.s32.totalorder %s24, 0
      %p59 = por %p57, %p58
      %p60 = scmp.ne.s32.totalorder %s46, %s47
      %p61 = scmp.eq.s32.totalorder %s25, 1
      %p62 = por %p60, %p61
      %p64 = scmp.ne.s32.totalorder %s47, %s63
      %p65 = scmp.eq.s32.totalorder %s25, 0
      %p66 = por %p64, %p65
      %s67 = ssub.s32 %s26, %s38
      %s68 = ssub.s32 %s27, %s34
      %s69 = sor.u32 %s67, %s68
      %p70 = scmp.eq.s32.totalorder %s69, 0
      %s72 = sadd.s32 %s71, 1
      %s73 = scalar_select %p70, %s71, %s72
      %p76 = pneg %p70
      %p77 = scmp.eq.s32.totalorder %s19, 1
      %p78 = por %p76, %p77
      %p79 = scmp.ne.s32.totalorder %s71, %s74
      %p80 = scmp.eq.s32.totalorder %s19, 0
      %p81 = por %p79, %p80
      %p82 = scmp.ne.s32.totalorder %s71, %s74
      %p83 = scmp.eq.s32.totalorder %s24, 1
      %p84 = por %p82, %p83
      %p85 = scmp.ne.s32.totalorder %s74, %s75
      %p86 = scmp.eq.s32.totalorder %s24, 0
      %p87 = por %p85, %p86
      %p88 = scmp.ne.s32.totalorder %s74, %s75
      %p89 = scmp.eq.s32.totalorder %s25, 1
      %p90 = por %p88, %p89
      %p92 = scmp.ne.s32.totalorder %s75, %s91
      %p93 = scmp.eq.s32.totalorder %s25, 0
      %p94 = por %p92, %p93
      %s95 = ssub.s32 %s26, %s38
      %p96 = scmp.eq.s32.totalorder %s95, 0
      %s98 = sadd.s32 %s97, 1
      %s99 = scalar_select %p96, %s97, %s98
      %p102 = pneg %p96
      %p103 = scmp.eq.s32.totalorder %s19, 1
      %p104 = por %p102, %p103
      %p105 = scmp.ne.s32.totalorder %s97, %s100
      %p106 = scmp.eq.s32.totalorder %s19, 0
      %p107 = por %p105, %p106
      %p108 = scmp.ne.s32.totalorder %s97, %s100
      %p109 = scmp.eq.s32.totalorder %s24, 1
      %p110 = por %p108, %p109
      %p111 = scmp.ne.s32.totalorder %s100, %s101
      %p112 = scmp.eq.s32.totalorder %s24, 0
      %p113 = por %p111, %p112
      %p114 = scmp.ne.s32.totalorder %s100, %s101
      %p115 = scmp.eq.s32.totalorder %s25, 1
      %p116 = por %p114, %p115
      %p118 = scmp.ne.s32.totalorder %s101, %s117
      %p119 = scmp.eq.s32.totalorder %s25, 0
      %p120 = por %p118, %p119
      %s121 = ssub.s32 %s26, %s38
      %p122 = scmp.eq.s32.totalorder %s121, 0
      %s124 = sadd.s32 %s123, 1
      %s125 = scalar_select %p122, %s123, %s124
      %p128 = pneg %p122
      %p129 = scmp.eq.s32.totalorder %s19, 1
      %p130 = por %p128, %p129
      %p131 = scmp.ne.s32.totalorder %s123, %s126
      %p132 = scmp.eq.s32.totalorder %s19, 0
      %p133 = por %p131, %p132
      %p134 = scmp.ne.s32.totalorder %s123, %s126
      %p135 = scmp.eq.s32.totalorder %s24, 1
      %p136 = por %p134, %p135
      %p137 = scmp.ne.s32.totalorder %s126, %s127
      %p138 = scmp.eq.s32.totalorder %s24, 0
      %p139 = por %p137, %p138
      %p140 = scmp.ne.s32.totalorder %s126, %s127
      %p141 = scmp.eq.s32.totalorder %s25, 1
      %p142 = por %p140, %p141
      %p144 = scmp.ne.s32.totalorder %s127, %s143
      %p145 = scmp.eq.s32.totalorder %s25, 0
      %p146 = por %p144, %p145
      %s147 = ssub.s32 %s26, %s38
      %p148 = scmp.eq.s32.totalorder %s147, 0
      %s150 = sadd.s32 %s149, 1
      %s151 = scalar_select %p148, %s149, %s150
      %p154 = pneg %p148
      %p155 = scmp.eq.s32.totalorder %s19, 1
      %p156 = por %p154, %p155
      %p157 = scmp.ne.s32.totalorder %s149, %s152
      %p158 = scmp.eq.s32.totalorder %s19, 0
      %p159 = por %p157, %p158
      %p160 = scmp.ne.s32.totalorder %s149, %s152
      %p161 = scmp.eq.s32.totalorder %s24, 1
      %p162 = por %p160, %p161
      %p163 = scmp.ne.s32.totalorder %s152, %s153
      %p164 = scmp.eq.s32.totalorder %s24, 0
      %p165 = por %p163, %p164
      %p166 = scmp.ne.s32.totalorder %s152, %s153
      %p167 = scmp.eq.s32.totalorder %s25, 1
      %p168 = por %p166, %p167
      %p170 = scmp.ne.s32.totalorder %s153, %s169
      %p171 = scmp.eq.s32.totalorder %s25, 0
      %p172 = por %p170, %p171
      %s173 = ssub.s32 %s26, %s38
      %p174 = scmp.eq.s32.totalorder %s173, 0
      %s176 = sadd.s32 %s175, 1
      %s177 = scalar_select %p174, %s175, %s176
      %p180 = pneg %p174
      %p181 = scmp.eq.s32.totalorder %s19, 1
      %p182 = por %p180, %p181
      %p183 = scmp.ne.s32.totalorder %s175, %s178
      %p184 = scmp.eq.s32.totalorder %s19, 0
      %p185 = por %p183, %p184
      %p186 = scmp.ne.s32.totalorder %s175, %s178
      %p187 = scmp.eq.s32.totalorder %s24, 1
      %p188 = por %p186, %p187
      %p189 = scmp.ne.s32.totalorder %s178, %s179
      %p190 = scmp.eq.s32.totalorder %s24, 0
      %p191 = por %p189, %p190
      %p192 = scmp.ne.s32.totalorder %s178, %s179
      %p193 = scmp.eq.s32.totalorder %s25, 1
      %p194 = por %p192, %p193
      %p196 = scmp.ne.s32.totalorder %s179, %s195
      %p197 = scmp.eq.s32.totalorder %s25, 0
      %p198 = por %p196, %p197
      %s199 = ssub.s32 %s26, %s38
      %p200 = scmp.eq.s32.totalorder %s199, 0
      %s202 = sadd.s32 %s201, 1
      %s203 = scalar_select %p200, %s201, %s202
      %p206 = pneg %p200
      %p207 = scmp.eq.s32.totalorder %s19, 1
      %p208 = por %p206, %p207
      %p209 = scmp.ne.s32.totalorder %s201, %s204
      %p210 = scmp.eq.s32.totalorder %s19, 0
      %p211 = por %p209, %p210
      %p212 = scmp.ne.s32.totalorder %s201, %s204
      %p213 = scmp.eq.s32.totalorder %s24, 1
      %p214 = por %p212, %p213
      %p215 = scmp.ne.s32.totalorder %s204, %s205
      %p216 = scmp.eq.s32.totalorder %s24, 0
      %p217 = por %p215, %p216
      %p218 = scmp.ne.s32.totalorder %s204, %s205
      %p219 = scmp.eq.s32.totalorder %s25, 1
      %p220 = por %p218, %p219
      %p222 = scmp.ne.s32.totalorder %s205, %s221
      %p223 = scmp.eq.s32.totalorder %s25, 0
      %p224 = por %p222, %p223
      %p225 = scmp.le.s32.totalorder 1, %s19
      %p226 = scmp.lt.s32.totalorder %s19, 3
      %p227 = pnand %p225, %p226
      %p228 = pneg %p227
      // Predicated region
      $region9: #{tpu_custom_call.1} parent=5 // pred_check
        _
      $region10: #{tpu_custom_call.1} parent=5 // pred_check_branch
        %230 = sbr.rel (%p227) target = $region12
      $region11: #{tpu_custom_call.1} parent=5 // pred_region
        %s231 = ssub.s32 %s19, 1
      $region12: #{tpu_custom_call.1} parent=5 // pred_fallthru
        _
      %p232 = scmp.lt.s32.totalorder %s19, 2
      // Predicated region
      $region13: #{tpu_custom_call.1} parent=5 // pred_check
        %p233 = pneg %p232
      $region14: #{tpu_custom_call.1} parent=5 // pred_check_branch
        %235 = sbr.rel (%p233) target = $region16
      $region15: #{tpu_custom_call.1} parent=5 // pred_region
        // Predicated region
        $region17: #{tpu_custom_call.1} parent=15 // pred_check
          %p236 = pneg %p53
        $region18: #{tpu_custom_call.1} parent=15 // pred_check_branch
          %238 = sbr.rel (%p236) target = $region20
        $region19: #{tpu_custom_call.1} parent=15 // pred_region
          %s239 = sand.u32 %s43, 1
          %s240 = scalar_lea.sflag [#allocation8], %s239
          %s241 = sand.u32 %s43, 1
          %s242 = smul.addr %s241, 16
          %s243 = scalar_lea.vmem [#allocation7], %s242
          %s244 = smul.u32 2, %s26
          %s246 = ssub.s32 256, 256
          %247 = vsyncadd %s240, %s246
          %s248 = sadd.s32 %s27, %s244
          %s249 = smul.addr %s248, 128
          %s250 = scalar_lea.hbm %s0, %s249
          %s251 = sshll.u32 %s243, 4
          %s252 = int_to_ptr.vmem [resolvable:$true] %s251
          %257 = dma.hbm_to_vmem [thread:$0]  %s250, 256, %s252, %s240, 128, 128, 8
        $region20: #{tpu_custom_call.1} parent=15 // pred_fallthru
          _
        // Predicated region
        $region21: #{tpu_custom_call.1} parent=15 // pred_check
          %p258 = pneg %p81
        $region22: #{tpu_custom_call.1} parent=15 // pred_check_branch
          %260 = sbr.rel (%p258) target = $region24
        $region23: #{tpu_custom_call.1} parent=15 // pred_region
          %s261 = sand.u32 %s71, 1
          %s262 = scalar_lea.sflag [#allocation10], %s261
          %s263 = sand.u32 %s71, 1
          %s264 = smul.addr %s263, 16
          %s265 = scalar_lea.vmem [#allocation9], %s264
          %s266 = smul.u32 2, %s26
          %s268 = ssub.s32 256, 256
          %269 = vsyncadd %s262, %s268
          %s270 = sadd.s32 %s27, %s266
          %s271 = smul.addr %s270, 128
          %s272 = scalar_lea.hbm %s1, %s271
          %s273 = sshll.u32 %s265, 4
          %s274 = int_to_ptr.vmem [resolvable:$true] %s273
          %279 = dma.hbm_to_vmem [thread:$0]  %s272, 256, %s274, %s262, 128, 128, 8
        $region24: #{tpu_custom_call.1} parent=15 // pred_fallthru
          _
      $region16: #{tpu_custom_call.1} parent=5 // pred_fallthru
        _
      %p280 = scmp.le.s32.totalorder 1, %s19
      %p281 = scmp.lt.s32.totalorder %s19, 3
      %p282 = pnand %p280, %p281
      %p283 = pneg %p282
      // Predicated region
      $region25: #{tpu_custom_call.1} parent=5 // pred_check
        _
      $region26: #{tpu_custom_call.1} parent=5 // pred_check_branch
        %285 = sbr.rel (%p282) target = $region28
      $region27: #{tpu_custom_call.1} parent=5 // pred_region
        %s286 = ssub.s32 %s19, 1
        %s287 = sand.u32 %s46, 1
        %s288 = scalar_lea.sflag [#allocation8], %s287
        %s289 = sand.u32 %s46, 1
        %s290 = smul.addr %s289, 16
        %s291 = scalar_lea.vmem [#allocation7], %s290
        // Predicated region
        $region29: #{tpu_custom_call.1} parent=27 // pred_check
          %p292 = pneg %p59
        $region30: #{tpu_custom_call.1} parent=27 // pred_check_branch
          %294 = sbr.rel (%p292) target = $region32
        $region31: #{tpu_custom_call.1} parent=27 // pred_region
          %295 = dma.done %s288, 256
        $region32: #{tpu_custom_call.1} parent=27 // pred_fallthru
          _
        %s296 = sand.u32 %s74, 1
        %s297 = scalar_lea.sflag [#allocation10], %s296
        %s298 = sand.u32 %s74, 1
        %s299 = smul.addr %s298, 16
        %s300 = scalar_lea.vmem [#allocation9], %s299
        // Predicated region
        $region33: #{tpu_custom_call.1} parent=27 // pred_check
          %p301 = pneg %p87
        $region34: #{tpu_custom_call.1} parent=27 // pred_check_branch
          %303 = sbr.rel (%p301) target = $region36
        $region35: #{tpu_custom_call.1} parent=27 // pred_region
          %304 = dma.done %s297, 256
        $region36: #{tpu_custom_call.1} parent=27 // pred_fallthru
          _
        %s305 = sand.u32 %s46, 1
        %s306 = scalar_lea.sflag [#allocation8], %s305
        %s307 = sand.u32 %s46, 1
        %s308 = smul.addr %s307, 16
        %s309 = scalar_lea.vmem [#allocation7], %s308
        %p310 = pneg %p59
        %p311 = pneg %p56
        %s312 = sand.u32 %s74, 1
        %s313 = scalar_lea.sflag [#allocation10], %s312
        %s314 = sand.u32 %s74, 1
        %s315 = smul.addr %s314, 16
        %s316 = scalar_lea.vmem [#allocation9], %s315
        %p317 = pneg %p87
        %p318 = pneg %p84
        %p319 = pneg %p113
        %p320 = pneg %p110
        %s321 = smul.u32 2, %s28
        %p322 = scmp.lt.s32.totalorder %s321, 3
        %s323 = scalar_select %p322, %s321, 3
        %s324 = smul.addr %s323, 8
        %s325 = scalar_lea.vmem %s2, %s324
        %p326 = pneg %p139
        %p327 = pneg %p136
        %s328 = smul.u32 2, %s28
        %p329 = scmp.lt.s32.totalorder %s328, 3
        %s330 = scalar_select %p329, %s328, 3
        %s331 = smul.addr %s330, 8
        %s332 = scalar_lea.vmem %s3, %s331
        %p333 = pneg %p165
        %p334 = pneg %p162
        %s335 = smul.u32 2, %s28
        %p336 = scmp.lt.s32.totalorder %s335, 3
        %s337 = scalar_select %p336, %s335, 3
        %s338 = smul.addr %s337, 8
        %s339 = scalar_lea.vmem %s4, %s338
        %p340 = pneg %p191
        %p341 = pneg %p188
        %s342 = smul.u32 2, %s28
        %p343 = scmp.lt.s32.totalorder %s342, 3
        %s344 = scalar_select %p343, %s342, 3
        %s345 = smul.addr %s344, 8
        %s346 = scalar_lea.vmem %s5, %s345
        %p347 = pneg %p217
        %p348 = pneg %p214
        %s349 = smul.u32 2, %s28
        %p350 = scmp.lt.s32.totalorder %s349, 3
        %s351 = scalar_select %p350, %s349, 3
        %s352 = smul.addr %s351, 8
        %s353 = scalar_lea.vmem %s6, %s352
        %s354 = smul.u32 2, %s28
        %s355 = smul.u32 2, %s28
        %s356 = smul.u32 2, %s28
        %p357 = scmp.lt.s32.totalorder %s356, 3
        %s358 = scalar_select %p357, %s356, 3
        %s359 = smul.addr %s358, 8
        %s360 = scalar_lea.vmem %s2, %s359
        %s361 = smul.u32 2, %s28
        %s362 = smul.u32 2, %s28
        %p363 = scmp.lt.s32.totalorder %s362, 3
        %s364 = scalar_select %p363, %s362, 3
        %s365 = smul.addr %s364, 8
        %s366 = scalar_lea.vmem %s3, %s365
        %s367 = smul.u32 2, %s28
        %s368 = smul.u32 2, %s28
        %p369 = scmp.lt.s32.totalorder %s368, 3
        %s370 = scalar_select %p369, %s368, 3
        %s371 = smul.addr %s370, 8
        %s372 = scalar_lea.vmem %s4, %s371
        %s373 = smul.u32 2, %s28
        %s374 = smul.u32 2, %s28
        %p375 = scmp.lt.s32.totalorder %s374, 3
        %s376 = scalar_select %p375, %s374, 3
        %s377 = smul.addr %s376, 8
        %s378 = scalar_lea.vmem %s5, %s377
        %s379 = smul.u32 2, %s28
        %s380 = smul.u32 2, %s28
        %p381 = scmp.lt.s32.totalorder %s380, 3
        %s382 = scalar_select %p381, %s380, 3
        %s383 = smul.addr %s382, 8
        %s384 = scalar_lea.vmem %s6, %s383
        %s385 = smul.u32 2, %s28
        %p386 = scmp.eq.s32.totalorder %s29, 0
        // Predicated region
        $region37: #{tpu_custom_call.1} parent=27 // pred_check
          %p387 = pneg %p386
        $region38: #{tpu_custom_call.1} parent=27 // pred_check_branch
          %389 = sbr.rel (%p387) target = $region40
        $region39: #{tpu_custom_call.1} parent=27 // pred_region
          %390 = vst [vmem:[#allocation2] sm:$0xff] 0.0
          %391 = vst [vmem:[#allocation2 + $0x8] sm:$0xff] 0.0
          %392 = vst [vmem:[#allocation3] sm:$0xff] 0.0
          %393 = vst [vmem:[#allocation3 + $0x8] sm:$0xff] 0.0
          %394 = vst [vmem:[#allocation4] sm:$0xff] 0.0
          %395 = vst [vmem:[#allocation4 + $0x8] sm:$0xff] 0.0
          %396 = vst [vmem:[#allocation5] sm:$0xff] 0.0
          %397 = vst [vmem:[#allocation5 + $0x8] sm:$0xff] 0.0
          %398 = vst [vmem:[#allocation6] sm:$0xff] 0.0
          %399 = vst [vmem:[#allocation6 + $0x8] sm:$0xff] 0.0
        $region40: #{tpu_custom_call.1} parent=27 // pred_fallthru
          _
        %v400 = vld [vmem:[#allocation2] sm:$0xff]
        %v401 = vld [vmem:[#allocation2 + $0x8] sm:$0xff]
        %v402 = vld [vmem:[#allocation3] sm:$0xff]
        %v403 = vld [vmem:[#allocation3 + $0x8] sm:$0xff]
        %v404 = vld [vmem:[#allocation4] sm:$0xff]
        %v405 = vld [vmem:[#allocation4 + $0x8] sm:$0xff]
        %v406 = vld [vmem:[#allocation5] sm:$0xff]
        %v407 = vld [vmem:[#allocation5 + $0x8] sm:$0xff]
        %v408 = vld [vmem:[#allocation6] sm:$0xff]
        %v409 = vld [vmem:[#allocation6 + $0x8] sm:$0xff]
        %v410 = vld [vmem:[%s291] sm:$0xff]
        %v411 = vld [vmem:[%s291 + $0x8] sm:$0xff]
        %v412 = vld [vmem:[%s300] sm:$0xff]
        %v413 = vld [vmem:[%s300 + $0x8] sm:$0xff]
        %v414 = vadd.f32 %v400, %v410
        %v415 = vadd.f32 %v401, %v411
        %v416 = vadd.f32 %v402, %v412
        %v417 = vadd.f32 %v403, %v413
        %v418 = vmul.f32 %v410, %v412
        %v419 = vmul.f32 %v411, %v413
        %v420 = vadd.f32 %v404, %v418
        %v421 = vadd.f32 %v405, %v419
        %v422 = vmul.f32 %v410, %v410
        %v423 = vmul.f32 %v411, %v411
        %v424 = vadd.f32 %v406, %v422
        %v425 = vadd.f32 %v407, %v423
        %v426 = vmul.f32 %v412, %v412
        %v427 = vmul.f32 %v413, %v413
        %v428 = vadd.f32 %v408, %v426
        %v429 = vadd.f32 %v409, %v427
        %430 = vst [vmem:[#allocation2] sm:$0xff] %v414
        %431 = vst [vmem:[#allocation2 + $0x8] sm:$0xff] %v415
        %432 = vst [vmem:[#allocation3] sm:$0xff] %v416
        %433 = vst [vmem:[#allocation3 + $0x8] sm:$0xff] %v417
        %434 = vst [vmem:[#allocation4] sm:$0xff] %v420
        %435 = vst [vmem:[#allocation4 + $0x8] sm:$0xff] %v421
        %436 = vst [vmem:[#allocation5] sm:$0xff] %v424
        %437 = vst [vmem:[#allocation5 + $0x8] sm:$0xff] %v425
        %438 = vst [vmem:[#allocation6] sm:$0xff] %v428
        %439 = vst [vmem:[#allocation6 + $0x8] sm:$0xff] %v429
        // Predicated region
        $region41: #{tpu_custom_call.1} parent=27 // pred_check
          %p440 = pneg %p386
        $region42: #{tpu_custom_call.1} parent=27 // pred_check_branch
          %442 = sbr.rel (%p440) target = $region44
        $region43: #{tpu_custom_call.1} parent=27 // pred_region
          %443 = vadd.xlane.f32.xlu0 %v414
          %v444 = vpop.xlane.xlu0 %443
          %445 = vadd.xlane.f32.xlu0 %v415
          %v446 = vpop.xlane.xlu0 %445
          %vm447 = vcmask 7168
          %448 = vst.msk [vmem:[%s360] sm:$0xff] %vm447, %v444
          %449 = vst.msk [vmem:[%s360 + $0x8] sm:$0xff] %vm447, %v446
          %450 = vadd.xlane.f32.xlu0 %v416
          %v451 = vpop.xlane.xlu0 %450
          %452 = vadd.xlane.f32.xlu0 %v417
          %v453 = vpop.xlane.xlu0 %452
          %454 = vst.msk [vmem:[%s366] sm:$0xff] %vm447, %v451
          %455 = vst.msk [vmem:[%s366 + $0x8] sm:$0xff] %vm447, %v453
          %456 = vadd.xlane.f32.xlu0 %v420
          %v457 = vpop.xlane.xlu0 %456
          %458 = vadd.xlane.f32.xlu0 %v421
          %v459 = vpop.xlane.xlu0 %458
          %460 = vst.msk [vmem:[%s372] sm:$0xff] %vm447, %v457
          %461 = vst.msk [vmem:[%s372 + $0x8] sm:$0xff] %vm447, %v459
          %462 = vadd.xlane.f32.xlu0 %v424
          %v463 = vpop.xlane.xlu0 %462
          %464 = vadd.xlane.f32.xlu0 %v425
          %v465 = vpop.xlane.xlu0 %464
          %466 = vst.msk [vmem:[%s378] sm:$0xff] %vm447, %v463
          %467 = vst.msk [vmem:[%s378 + $0x8] sm:$0xff] %vm447, %v465
          %468 = vadd.xlane.f32.xlu0 %v428
          %v469 = vpop.xlane.xlu0 %468
          %470 = vadd.xlane.f32.xlu0 %v429
          %v471 = vpop.xlane.xlu0 %470
          %472 = vst.msk [vmem:[%s384] sm:$0xff] %vm447, %v469
          %473 = vst.msk [vmem:[%s384 + $0x8] sm:$0xff] %vm447, %v471
        $region44: #{tpu_custom_call.1} parent=27 // pred_fallthru
          _
        %s474 = smul.u32 2, %s28
        %p475 = scmp.lt.s32.totalorder %s474, 3
        %s476 = scalar_select %p475, %s474, 3
        %s477 = smul.addr %s476, 8
        %s478 = scalar_lea.vmem %s2, %s477
        %s479 = smul.u32 2, %s28
        %p480 = scmp.lt.s32.totalorder %s479, 3
        %s481 = scalar_select %p480, %s479, 3
        %s482 = smul.addr %s481, 8
        %s483 = scalar_lea.vmem %s3, %s482
        %s484 = smul.u32 2, %s28
        %p485 = scmp.lt.s32.totalorder %s484, 3
        %s486 = scalar_select %p485, %s484, 3
        %s487 = smul.addr %s486, 8
        %s488 = scalar_lea.vmem %s4, %s487
        %s489 = smul.u32 2, %s28
        %p490 = scmp.lt.s32.totalorder %s489, 3
        %s491 = scalar_select %p490, %s489, 3
        %s492 = smul.addr %s491, 8
        %s493 = scalar_lea.vmem %s5, %s492
        %s494 = smul.u32 2, %s28
        %p495 = scmp.lt.s32.totalorder %s494, 3
        %s496 = scalar_select %p495, %s494, 3
        %s497 = smul.addr %s496, 8
        %s498 = scalar_lea.vmem %s6, %s497
        // Predicated region
        $region45: #{tpu_custom_call.1} parent=27 // pred_check
          %p499 = pneg %p110
        $region46: #{tpu_custom_call.1} parent=27 // pred_check_branch
          %501 = sbr.rel (%p499) target = $region48
        $region47: #{tpu_custom_call.1} parent=27 // pred_region
          %s502 = smul.u32 2, %s28
        $region48: #{tpu_custom_call.1} parent=27 // pred_fallthru
          _
        // Predicated region
        $region49: #{tpu_custom_call.1} parent=27 // pred_check
          %p503 = pneg %p136
        $region50: #{tpu_custom_call.1} parent=27 // pred_check_branch
          %505 = sbr.rel (%p503) target = $region52
        $region51: #{tpu_custom_call.1} parent=27 // pred_region
          %s506 = smul.u32 2, %s28
        $region52: #{tpu_custom_call.1} parent=27 // pred_fallthru
          _
        // Predicated region
        $region53: #{tpu_custom_call.1} parent=27 // pred_check
          %p507 = pneg %p162
        $region54: #{tpu_custom_call.1} parent=27 // pred_check_branch
          %509 = sbr.rel (%p507) target = $region56
        $region55: #{tpu_custom_call.1} parent=27 // pred_region
          %s510 = smul.u32 2, %s28
        $region56: #{tpu_custom_call.1} parent=27 // pred_fallthru
          _
        // Predicated region
        $region57: #{tpu_custom_call.1} parent=27 // pred_check
          %p511 = pneg %p188
        $region58: #{tpu_custom_call.1} parent=27 // pred_check_branch
          %513 = sbr.rel (%p511) target = $region60
        $region59: #{tpu_custom_call.1} parent=27 // pred_region
          %s514 = smul.u32 2, %s28
        $region60: #{tpu_custom_call.1} parent=27 // pred_fallthru
          _
        // Predicated region
        $region61: #{tpu_custom_call.1} parent=27 // pred_check
          %p515 = pneg %p214
        $region62: #{tpu_custom_call.1} parent=27 // pred_check_branch
          %517 = sbr.rel (%p515) target = $region64
        $region63: #{tpu_custom_call.1} parent=27 // pred_region
          %s518 = smul.u32 2, %s28
        $region64: #{tpu_custom_call.1} parent=27 // pred_fallthru
          _
      $region28: #{tpu_custom_call.1} parent=5 // pred_fallthru
        _
      %p519 = scmp.le.s32.totalorder 2, %s19
      // Predicated region
      $region65: #{tpu_custom_call.1} parent=5 // pred_check
        %p520 = pneg %p519
      $region66: #{tpu_custom_call.1} parent=5 // pred_check_branch
        %522 = sbr.rel (%p520) target = $region68
      $region67: #{tpu_custom_call.1} parent=5 // pred_region
        %s523 = ssub.s32 %s19, 2
        // Predicated region
        $region69: #{tpu_custom_call.1} parent=67 // pred_check
          %p524 = pneg %p116
        $region70: #{tpu_custom_call.1} parent=67 // pred_check_branch
          %526 = sbr.rel (%p524) target = $region72
        $region71: #{tpu_custom_call.1} parent=67 // pred_region
          %s527 = smul.u32 2, %s30
          %p528 = scmp.lt.s32.totalorder %s527, 3
          %s529 = scalar_select %p528, %s527, 3
          %s530 = smul.addr %s529, 8
          %s531 = scalar_lea.vmem %s2, %s530
        $region72: #{tpu_custom_call.1} parent=67 // pred_fallthru
          _
        // Predicated region
        $region73: #{tpu_custom_call.1} parent=67 // pred_check
          %p532 = pneg %p142
        $region74: #{tpu_custom_call.1} parent=67 // pred_check_branch
          %534 = sbr.rel (%p532) target = $region76
        $region75: #{tpu_custom_call.1} parent=67 // pred_region
          %s535 = smul.u32 2, %s30
          %p536 = scmp.lt.s32.totalorder %s535, 3
          %s537 = scalar_select %p536, %s535, 3
          %s538 = smul.addr %s537, 8
          %s539 = scalar_lea.vmem %s3, %s538
        $region76: #{tpu_custom_call.1} parent=67 // pred_fallthru
          _
        // Predicated region
        $region77: #{tpu_custom_call.1} parent=67 // pred_check
          %p540 = pneg %p168
        $region78: #{tpu_custom_call.1} parent=67 // pred_check_branch
          %542 = sbr.rel (%p540) target = $region80
        $region79: #{tpu_custom_call.1} parent=67 // pred_region
          %s543 = smul.u32 2, %s30
          %p544 = scmp.lt.s32.totalorder %s543, 3
          %s545 = scalar_select %p544, %s543, 3
          %s546 = smul.addr %s545, 8
          %s547 = scalar_lea.vmem %s4, %s546
        $region80: #{tpu_custom_call.1} parent=67 // pred_fallthru
          _
        // Predicated region
        $region81: #{tpu_custom_call.1} parent=67 // pred_check
          %p548 = pneg %p194
        $region82: #{tpu_custom_call.1} parent=67 // pred_check_branch
          %550 = sbr.rel (%p548) target = $region84
        $region83: #{tpu_custom_call.1} parent=67 // pred_region
          %s551 = smul.u32 2, %s30
          %p552 = scmp.lt.s32.totalorder %s551, 3
          %s553 = scalar_select %p552, %s551, 3
          %s554 = smul.addr %s553, 8
          %s555 = scalar_lea.vmem %s5, %s554
        $region84: #{tpu_custom_call.1} parent=67 // pred_fallthru
          _
        // Predicated region
        $region85: #{tpu_custom_call.1} parent=67 // pred_check
          %p556 = pneg %p220
        $region86: #{tpu_custom_call.1} parent=67 // pred_check_branch
          %558 = sbr.rel (%p556) target = $region88
        $region87: #{tpu_custom_call.1} parent=67 // pred_region
          %s559 = smul.u32 2, %s30
          %p560 = scmp.lt.s32.totalorder %s559, 3
          %s561 = scalar_select %p560, %s559, 3
          %s562 = smul.addr %s561, 8
          %s563 = scalar_lea.vmem %s6, %s562
        $region88: #{tpu_custom_call.1} parent=67 // pred_fallthru
          _
      $region68: #{tpu_custom_call.1} parent=5 // pred_fallthru
        _
    $region6: #{tpu_custom_call.1} parent=1 // loop_footer
      %s23 = sadd.s32 1, %s19
    $region7: #{tpu_custom_call.1} parent=1 // loop_footer_branch
      %18 = sbr.rel target = $region3
    $region8: #{tpu_custom_call.1} parent=1 // loop_exit
      _
    %564 = vsyncpa [#allocation8], 1
    %s565 = scalar_lea.sflag [#allocation8], 1
    %566 = vsyncpa %s565, 1
    %567 = vsyncpa [#allocation10], 1
    %s568 = scalar_lea.sflag [#allocation10], 1
    %569 = vsyncpa %s568, 1

</llo_original>
